<compile_context>
chip_gen: v7x
topology: tpu7x:2x2x1
jax: 0.10.0
libtpu: 0.0.40
codegen_flags: <defaults>
</compile_context>

<pallas_src>
import math

import jax
import jax.numpy as jnp
from jax.experimental import pallas as pl
from jax.experimental.pallas import tpu as pltpu

# ---- model hyperparameters (small, consistent with the module) ----
B = 2          # batch
S = 8          # sequence length
D = 32         # d_model
H = 4          # num_heads
D_K = D // H   # per-head dim
DFF = 64       # feed-forward hidden dim
EPS = 1e-6
R = B * S      # rows of position-wise math (batch folded into one tile)

# 128-lane-aligned column offsets inside the packed weight slab.
C_QKV = 0            # [D, 3D]   fused QKV weights (scale folded into Q columns)
C_O = 128            # [D, D]    output projection
C_W1 = 256           # [D, DFF]  FFN first matmul
C_W2T = 384          # [D, DFF]  FFN second matmul, stored transposed (== w2.T)
W_SLAB_SHAPE = (D, 512)
VEC_SLAB_SHAPE = (3, 128)


def _layer_norm(y, gamma, beta):
    mean = jnp.mean(y, axis=-1, keepdims=True)
    var = jnp.mean((y - mean) ** 2, axis=-1, keepdims=True)
    return (y - mean) * jax.lax.rsqrt(var + EPS) * gamma + beta


def encoder_layer_kernel(x_ref, bias_ref, w_ref, vec_ref, out_ref):
    x = x_ref[...]                                   # [R, D] f32 (residuals / LN in f32)
    xb = x.astype(jnp.bfloat16)
    bias = bias_ref[...]                             # [R, R] f32, precomputed in wrapper

    # ---- parameter slabs (static, lane-aligned slices) ----
    w_qkv = w_ref[:, C_QKV:C_QKV + 3 * D]            # [D, 3D] bf16
    w_o = w_ref[:, C_O:C_O + D]                      # [D, D]  bf16
    w_1 = w_ref[:, C_W1:C_W1 + DFF]                  # [D, DFF] bf16
    w_2t = w_ref[:, C_W2T:C_W2T + DFF]               # [D, DFF] bf16 (== w2.T)

    b_qkv = vec_ref[0:1, 0:3 * D]                    # [1, 3D] f32
    b_o = vec_ref[0:1, 3 * D:4 * D]                  # [1, D]
    g1 = vec_ref[1:2, 0:D]
    be1 = vec_ref[1:2, D:2 * D]
    g2 = vec_ref[1:2, 2 * D:3 * D]
    be2 = vec_ref[1:2, 3 * D:4 * D]
    b_1 = vec_ref[2:3, 0:DFF]
    b_2 = vec_ref[2:3, DFF:DFF + D]

    # ---- fused QKV projection: one MXU push, f32 accumulation ----
    qkv = jnp.dot(xb, w_qkv, preferred_element_type=jnp.float32) + b_qkv   # [R, 3D]
    q = qkv[:, 0:D].astype(jnp.bfloat16)             # 1/sqrt(d_k) already folded in
    k = qkv[:, D:2 * D].astype(jnp.bfloat16)
    v = qkv[:, 2 * D:3 * D].astype(jnp.bfloat16)

    dn_last = (((1,), (1,)), ((), ()))   # contract last dims of both operands

    # ---- per-head score matmuls, softmax batched across ALL heads (one chain) ----
    sc = jnp.concatenate(
        [jax.lax.dot_general(q[:, h * D_K:(h + 1) * D_K],
                             k[:, h * D_K:(h + 1) * D_K],
                             dn_last, preferred_element_type=jnp.float32) + bias
         for h in range(H)],
        axis=0)                                                             # [H*R, R]
    m = jnp.max(sc, axis=-1, keepdims=True)
    e = jnp.exp(sc - m)
    inv = pl.reciprocal(jnp.sum(e, axis=-1, keepdims=True), approx=False)
    p = (e * inv).astype(jnp.bfloat16)                                      # [H*R, R]

    # ---- per-head p @ v, lane-pack heads, then ONE output-projection matmul ----
    heads = jnp.concatenate(
        [jnp.dot(p[h * R:(h + 1) * R, :], v[:, h * D_K:(h + 1) * D_K],
                 preferred_element_type=jnp.float32)
         for h in range(H)],
        axis=-1).astype(jnp.bfloat16)                                       # [R, D]
    attn = jnp.dot(heads, w_o, preferred_element_type=jnp.float32) + b_o    # [R, D]

    # ---- residual + LayerNorm 1 (f32) ----
    y = _layer_norm(x + attn, g1, be1)

    # ---- position-wise FFN (bf16 MXU operands, f32 accumulate / elementwise) ----
    h1 = jnp.maximum(
        jnp.dot(y.astype(jnp.bfloat16), w_1, preferred_element_type=jnp.float32) + b_1,
        0.0)                                                                # [R, DFF]
    ffn = jax.lax.dot_general(h1.astype(jnp.bfloat16), w_2t, dn_last,
                              preferred_element_type=jnp.float32) + b_2     # [R, D]

    # ---- residual + LayerNorm 2 ----
    # TODO(synk): training-mode dropout (p=0.1) not implemented (inference semantics).
    out_ref[...] = _layer_norm(y + ffn, g2, be2).astype(out_ref.dtype)


def pack_params(params):
    """One-time packing (hoist out of the per-call hot path).

    Returns (w_slab, vec_slab):
      w_slab  [32, 512] bf16: [qkv | pad | wo | pad | w1 | pad | w2^T | pad], each
              matrix starting at a 128-lane boundary. 1/sqrt(d_k) is folded into the
              Q columns (and bq) so the kernel needs no explicit score scaling.
      vec_slab [3, 128] f32: biases and LayerNorm affine parameters.
    """
    (wq, bq, wk, bk, wv, bv, wo, bo, g1, be1, w1, b1, w2, b2, g2, be2) = params
    scale = 1.0 / math.sqrt(D_K)

    def _pad_cols(mat, width):
        return jnp.pad(mat, ((0, 0), (0, width - mat.shape[1])))

    w_slab = jnp.concatenate([
        _pad_cols(jnp.concatenate([wq * scale, wk, wv], axis=1), 128),   # cols   0:128
        _pad_cols(wo, 128),                                              # cols 128:256
        _pad_cols(w1, 128),                                              # cols 256:384
        _pad_cols(w2.T, 128),                                            # cols 384:512
    ], axis=1).astype(jnp.bfloat16)

    def _row(*parts):
        r = jnp.concatenate([p.reshape(-1) for p in parts])
        return jnp.pad(r, (0, 128 - r.shape[0]))

    vec_slab = jnp.stack([
        _row(bq * scale, bk, bv, bo),   # [b_qkv | b_o]
        _row(g1, be1, g2, be2),         # LayerNorm gammas / betas
        _row(b1, b2),                   # FFN biases (+ zero pad)
    ]).astype(jnp.float32)

    return w_slab, vec_slab


def _build_bias(mask):
    """[R, R] additive attention bias: key-padding (-1e9 on masked keys, matching the
    PyTorch reference) plus a block-diagonal term so rows of one batch element never
    attend to keys of another (the batch is folded into a single [R, D] tile)."""
    keypad = mask.reshape(1, R).astype(jnp.float32) * (-1e9)
    blk = jnp.arange(R, dtype=jnp.int32) // S
    block_diag = jnp.where(blk[:, None] == blk[None, :], 0.0, -1e9)
    return keypad + block_diag


def encoder_layer(x, mask, packed):
    """x: [B, S, D] f32, mask: [B, 1, S] (1.0 = masked key), packed = pack_params(...)."""
    w_slab, vec_slab = packed
    bias = _build_bias(mask)
    out = pl.pallas_call(
        encoder_layer_kernel,
        out_shape=jax.ShapeDtypeStruct((R, D), jnp.float32),
        grid_spec=pltpu.PrefetchScalarGridSpec(
            num_scalar_prefetch=0,
            grid=(1,),                                            # whole problem, one step
            in_specs=[
                pl.BlockSpec((R, D), lambda i: (0, 0)),           # x (batch folded)
                pl.BlockSpec((R, R), lambda i: (0, 0)),           # attention bias
                pl.BlockSpec(W_SLAB_SHAPE, lambda i: (0, 0)),     # packed weights (bf16)
                pl.BlockSpec(VEC_SLAB_SHAPE, lambda i: (0, 0)),   # packed biases / LN
            ],
            out_specs=pl.BlockSpec((R, D), lambda i: (0, 0)),
        ),
        compiler_params=pltpu.CompilerParams(
            dimension_semantics=("arbitrary",),
        ),
    )(x.reshape(R, D), bias, w_slab, vec_slab)
    return out.reshape(B, S, D)


def _reference(x, mask, params):
    (wq, bq, wk, bk, wv, bv, wo, bo, g1, be1, w1, b1, w2, b2, g2, be2) = params

    def ln(y, g, bta):
        mu = jnp.mean(y, -1, keepdims=True)
        var = jnp.mean((y - mu) ** 2, -1, keepdims=True)
        return (y - mu) / jnp.sqrt(var + EPS) * g + bta

    q = (x @ wq + bq).reshape(B, S, H, D_K).transpose(0, 2, 1, 3)
    k = (x @ wk + bk).reshape(B, S, H, D_K).transpose(0, 2, 1, 3)
    v = (x @ wv + bv).reshape(B, S, H, D_K).transpose(0, 2, 1, 3)
    scores = jnp.einsum("bhqd,bhkd->bhqk", q, k) / math.sqrt(D_K)
    scores = scores + mask[:, None, :, :] * (-1e9)
    p = jax.nn.softmax(scores, axis=-1)
    attn = jnp.einsum("bhqk,bhkd->bhqd", p, v).transpose(0, 2, 1, 3).reshape(B, S, D)
    attn = attn @ wo + bo
    y = ln(x + attn, g1, be1)
    ffn = jnp.maximum(y @ w1 + b1, 0.0) @ w2 + b2
    return ln(y + ffn, g2, be2)


if __name__ == "__main__":
    key = jax.random.PRNGKey(0)
    keys = jax.random.split(key, 8)

    x = jax.random.normal(keys[0], (B, S, D), dtype=jnp.float32)
    # key-padding style mask: 1.0 = masked-out position, 0.0 = attend
    mask = (jax.random.uniform(keys[1], (B, 1, S)) < 0.2).astype(jnp.float32)

    def linear_init(k, fan_in, fan_out):
        kw, kb = jax.random.split(k)
        bound = 1.0 / math.sqrt(fan_in)
        w = jax.random.uniform(kw, (fan_in, fan_out), minval=-bound, maxval=bound)
        b = jax.random.uniform(kb, (1, fan_out), minval=-bound, maxval=bound)
        return w.astype(jnp.float32), b.astype(jnp.float32)

    wq, bq = linear_init(keys[2], D, D)
    wk, bk = linear_init(keys[3], D, D)
    wv, bv = linear_init(keys[4], D, D)
    wo, bo = linear_init(keys[5], D, D)
    w1, b1 = linear_init(keys[6], D, DFF)
    w2, b2 = linear_init(keys[7], DFF, D)
    g1 = jnp.ones((1, D), jnp.float32)
    be1 = jnp.zeros((1, D), jnp.float32)
    g2 = jnp.ones((1, D), jnp.float32)
    be2 = jnp.zeros((1, D), jnp.float32)

    params = (wq, bq, wk, bk, wv, bv, wo, bo, g1, be1, w1, b1, w2, b2, g2, be2)

    # One-time packing, hoisted out of the per-call path.
    packed = pack_params(params)
    fwd = jax.jit(encoder_layer)

    out = jax.block_until_ready(fwd(x, mask, packed))

    ref = _reference(x, mask, params)
    # tolerance accounts for bf16 MXU operands (f32 accumulation / softmax / LayerNorm)
    assert jnp.allclose(out, ref, atol=5e-2, rtol=5e-2), "mismatch vs JAX reference"

    print("KERNEL_OK")
</pallas_src>

<mosaic_0001>
module attributes {stable_mosaic.version = 11 : i64} {
  func.func @encoder_layer_kernel(%arg0: i32, %arg1: memref<16x32xf32, #tpu.memory_space<vmem>>, %arg2: memref<16x16xf32, #tpu.memory_space<vmem>>, %arg3: memref<32x512xbf16, #tpu.memory_space<vmem>>, %arg4: memref<3x128xf32, #tpu.memory_space<vmem>>, %arg5: memref<16x32xf32, #tpu.memory_space<vmem>>) attributes {dimension_semantics = [#tpu.dimension_semantics<arbitrary>], iteration_bounds = array<i64: 1>, scalar_prefetch = 0 : i64, scratch_operands = 0 : i64, tpu.core_type = #tpu.core_type<tc>, window_params = [{pipeline_mode = #tpu.pipeline_mode<synchronous>, transform_indices = @transform_0, window_bounds = array<i64: 16, 32>}, {pipeline_mode = #tpu.pipeline_mode<synchronous>, transform_indices = @transform_1, window_bounds = array<i64: 16, 16>}, {pipeline_mode = #tpu.pipeline_mode<synchronous>, transform_indices = @transform_2, window_bounds = array<i64: 32, 512>}, {pipeline_mode = #tpu.pipeline_mode<synchronous>, transform_indices = @transform_3, window_bounds = array<i64: 3, 128>}, {pipeline_mode = #tpu.pipeline_mode<synchronous>, transform_indices = @transform_4, window_bounds = array<i64: 16, 32>}]} {
    %c0 = arith.constant 0 : index
    %c0_0 = arith.constant 0 : index
    %0 = vector.load %arg1[%c0, %c0_0] : memref<16x32xf32, #tpu.memory_space<vmem>>, vector<16x32xf32>
    %1 = arith.truncf %0 : vector<16x32xf32> to vector<16x32xbf16>
    %c0_1 = arith.constant 0 : index
    %c0_2 = arith.constant 0 : index
    %2 = vector.load %arg2[%c0_1, %c0_2] : memref<16x16xf32, #tpu.memory_space<vmem>>, vector<16x16xf32>
    %c0_3 = arith.constant 0 : index
    %c0_4 = arith.constant 0 : index
    %3 = vector.load %arg3[%c0_3, %c0_4] : memref<32x512xbf16, #tpu.memory_space<vmem>>, vector<32x96xbf16>
    %c0_5 = arith.constant 0 : index
    %c128 = arith.constant 128 : index
    %4 = vector.load %arg3[%c0_5, %c128] : memref<32x512xbf16, #tpu.memory_space<vmem>>, vector<32x32xbf16>
    %c0_6 = arith.constant 0 : index
    %c256 = arith.constant 256 : index
    %5 = vector.load %arg3[%c0_6, %c256] : memref<32x512xbf16, #tpu.memory_space<vmem>>, vector<32x64xbf16>
    %c0_7 = arith.constant 0 : index
    %c384 = arith.constant 384 : index
    %6 = vector.load %arg3[%c0_7, %c384] : memref<32x512xbf16, #tpu.memory_space<vmem>>, vector<32x64xbf16>
    %c0_8 = arith.constant 0 : index
    %c0_9 = arith.constant 0 : index
    %7 = vector.load %arg4[%c0_8, %c0_9] : memref<3x128xf32, #tpu.memory_space<vmem>>, vector<1x96xf32>
    %c0_10 = arith.constant 0 : index
    %c96 = arith.constant 96 : index
    %8 = vector.load %arg4[%c0_10, %c96] : memref<3x128xf32, #tpu.memory_space<vmem>>, vector<1x32xf32>
    %c1 = arith.constant 1 : index
    %c0_11 = arith.constant 0 : index
    %9 = vector.load %arg4[%c1, %c0_11] : memref<3x128xf32, #tpu.memory_space<vmem>>, vector<1x32xf32>
    %c1_12 = arith.constant 1 : index
    %c32 = arith.constant 32 : index
    %10 = vector.load %arg4[%c1_12, %c32] : memref<3x128xf32, #tpu.memory_space<vmem>>, vector<1x32xf32>
    %c1_13 = arith.constant 1 : index
    %c64 = arith.constant 64 : index
    %11 = vector.load %arg4[%c1_13, %c64] : memref<3x128xf32, #tpu.memory_space<vmem>>, vector<1x32xf32>
    %c1_14 = arith.constant 1 : index
    %c96_15 = arith.constant 96 : index
    %12 = vector.load %arg4[%c1_14, %c96_15] : memref<3x128xf32, #tpu.memory_space<vmem>>, vector<1x32xf32>
    %c2 = arith.constant 2 : index
    %c0_16 = arith.constant 0 : index
    %13 = vector.load %arg4[%c2, %c0_16] : memref<3x128xf32, #tpu.memory_space<vmem>>, vector<1x64xf32>
    %c2_17 = arith.constant 2 : index
    %c64_18 = arith.constant 64 : index
    %14 = vector.load %arg4[%c2_17, %c64_18] : memref<3x128xf32, #tpu.memory_space<vmem>>, vector<1x32xf32>
    %cst = arith.constant dense<0.000000e+00> : vector<16x96xf32>
    %15 = tpu.matmul %1, %3, %cst {dimension_numbers = #tpu.dot_dimension_numbers<[1], [0], [0], [1], [0, 0, 1, 1], [], []>} : vector<16x32xbf16>, vector<32x96xbf16>, vector<16x96xf32> -> vector<16x96xf32>
    %16 = vector.broadcast %7 : vector<1x96xf32> to vector<16x96xf32>
    %17 = arith.addf %15, %16 : vector<16x96xf32>
    %18 = vector.extract_strided_slice %17 {offsets = [0, 0], sizes = [16, 32], strides = [1, 1]} : vector<16x96xf32> to vector<16x32xf32>
    %19 = arith.truncf %18 : vector<16x32xf32> to vector<16x32xbf16>
    %20 = vector.extract_strided_slice %17 {offsets = [0, 32], sizes = [16, 32], strides = [1, 1]} : vector<16x96xf32> to vector<16x32xf32>
    %21 = arith.truncf %20 : vector<16x32xf32> to vector<16x32xbf16>
    %22 = vector.extract_strided_slice %17 {offsets = [0, 64], sizes = [16, 32], strides = [1, 1]} : vector<16x96xf32> to vector<16x32xf32>
    %23 = arith.truncf %22 : vector<16x32xf32> to vector<16x32xbf16>
    %24 = vector.extract_strided_slice %19 {offsets = [0, 0], sizes = [16, 8], strides = [1, 1]} : vector<16x32xbf16> to vector<16x8xbf16>
    %25 = vector.extract_strided_slice %21 {offsets = [0, 0], sizes = [16, 8], strides = [1, 1]} : vector<16x32xbf16> to vector<16x8xbf16>
    %cst_19 = arith.constant dense<0.000000e+00> : vector<16x16xf32>
    %26 = tpu.matmul %24, %25, %cst_19 {dimension_numbers = #tpu.dot_dimension_numbers<[1], [1], [0], [0], [0, 0, 1, 0], [], []>} : vector<16x8xbf16>, vector<16x8xbf16>, vector<16x16xf32> -> vector<16x16xf32>
    %27 = arith.addf %26, %2 : vector<16x16xf32>
    %28 = vector.extract_strided_slice %19 {offsets = [0, 8], sizes = [16, 8], strides = [1, 1]} : vector<16x32xbf16> to vector<16x8xbf16>
    %29 = vector.extract_strided_slice %21 {offsets = [0, 8], sizes = [16, 8], strides = [1, 1]} : vector<16x32xbf16> to vector<16x8xbf16>
    %cst_20 = arith.constant dense<0.000000e+00> : vector<16x16xf32>
    %30 = tpu.matmul %28, %29, %cst_20 {dimension_numbers = #tpu.dot_dimension_numbers<[1], [1], [0], [0], [0, 0, 1, 0], [], []>} : vector<16x8xbf16>, vector<16x8xbf16>, vector<16x16xf32> -> vector<16x16xf32>
    %31 = arith.addf %30, %2 : vector<16x16xf32>
    %32 = vector.extract_strided_slice %19 {offsets = [0, 16], sizes = [16, 8], strides = [1, 1]} : vector<16x32xbf16> to vector<16x8xbf16>
    %33 = vector.extract_strided_slice %21 {offsets = [0, 16], sizes = [16, 8], strides = [1, 1]} : vector<16x32xbf16> to vector<16x8xbf16>
    %cst_21 = arith.constant dense<0.000000e+00> : vector<16x16xf32>
    %34 = tpu.matmul %32, %33, %cst_21 {dimension_numbers = #tpu.dot_dimension_numbers<[1], [1], [0], [0], [0, 0, 1, 0], [], []>} : vector<16x8xbf16>, vector<16x8xbf16>, vector<16x16xf32> -> vector<16x16xf32>
    %35 = arith.addf %34, %2 : vector<16x16xf32>
    %36 = vector.extract_strided_slice %19 {offsets = [0, 24], sizes = [16, 8], strides = [1, 1]} : vector<16x32xbf16> to vector<16x8xbf16>
    %37 = vector.extract_strided_slice %21 {offsets = [0, 24], sizes = [16, 8], strides = [1, 1]} : vector<16x32xbf16> to vector<16x8xbf16>
    %cst_22 = arith.constant dense<0.000000e+00> : vector<16x16xf32>
    %38 = tpu.matmul %36, %37, %cst_22 {dimension_numbers = #tpu.dot_dimension_numbers<[1], [1], [0], [0], [0, 0, 1, 0], [], []>} : vector<16x8xbf16>, vector<16x8xbf16>, vector<16x16xf32> -> vector<16x16xf32>
    %39 = arith.addf %38, %2 : vector<16x16xf32>
    %40 = tpu.concatenate %27, %31, %35, %39 in 0 : vector<16x16xf32>, vector<16x16xf32>, vector<16x16xf32>, vector<16x16xf32> -> vector<64x16xf32>
    %cst_23 = arith.constant dense<0xFF800000> : vector<64xf32>
    %41 = vector.multi_reduction <maximumf>, %40, %cst_23 [1] : vector<64x16xf32> to vector<64xf32>
    %42 = vector.shape_cast %41 : vector<64xf32> to vector<64x1xf32>
    %43 = vector.broadcast %42 : vector<64x1xf32> to vector<64x16xf32>
    %44 = arith.subf %40, %43 : vector<64x16xf32>
    %45 = math.exp %44 : vector<64x16xf32>
    %cst_24 = arith.constant dense<0.000000e+00> : vector<64xf32>
    %46 = vector.multi_reduction <add>, %45, %cst_24 [1] : vector<64x16xf32> to vector<64xf32>
    %47 = vector.shape_cast %46 : vector<64xf32> to vector<64x1xf32>
    %48 = tpu.reciprocal %47 : vector<64x1xf32> -> vector<64x1xf32>
    %49 = vector.broadcast %48 : vector<64x1xf32> to vector<64x16xf32>
    %50 = arith.mulf %45, %49 : vector<64x16xf32>
    %51 = arith.truncf %50 : vector<64x16xf32> to vector<64x16xbf16>
    %52 = vector.extract_strided_slice %51 {offsets = [0, 0], sizes = [16, 16], strides = [1, 1]} : vector<64x16xbf16> to vector<16x16xbf16>
    %53 = vector.extract_strided_slice %23 {offsets = [0, 0], sizes = [16, 8], strides = [1, 1]} : vector<16x32xbf16> to vector<16x8xbf16>
    %cst_25 = arith.constant dense<0.000000e+00> : vector<16x8xf32>
    %54 = tpu.matmul %52, %53, %cst_25 {dimension_numbers = #tpu.dot_dimension_numbers<[1], [0], [0], [1], [0, 0, 1, 1], [], []>} : vector<16x16xbf16>, vector<16x8xbf16>, vector<16x8xf32> -> vector<16x8xf32>
    %55 = vector.extract_strided_slice %51 {offsets = [16, 0], sizes = [16, 16], strides = [1, 1]} : vector<64x16xbf16> to vector<16x16xbf16>
    %56 = vector.extract_strided_slice %23 {offsets = [0, 8], sizes = [16, 8], strides = [1, 1]} : vector<16x32xbf16> to vector<16x8xbf16>
    %cst_26 = arith.constant dense<0.000000e+00> : vector<16x8xf32>
    %57 = tpu.matmul %55, %56, %cst_26 {dimension_numbers = #tpu.dot_dimension_numbers<[1], [0], [0], [1], [0, 0, 1, 1], [], []>} : vector<16x16xbf16>, vector<16x8xbf16>, vector<16x8xf32> -> vector<16x8xf32>
    %58 = vector.extract_strided_slice %51 {offsets = [32, 0], sizes = [16, 16], strides = [1, 1]} : vector<64x16xbf16> to vector<16x16xbf16>
    %59 = vector.extract_strided_slice %23 {offsets = [0, 16], sizes = [16, 8], strides = [1, 1]} : vector<16x32xbf16> to vector<16x8xbf16>
    %cst_27 = arith.constant dense<0.000000e+00> : vector<16x8xf32>
    %60 = tpu.matmul %58, %59, %cst_27 {dimension_numbers = #tpu.dot_dimension_numbers<[1], [0], [0], [1], [0, 0, 1, 1], [], []>} : vector<16x16xbf16>, vector<16x8xbf16>, vector<16x8xf32> -> vector<16x8xf32>
    %61 = vector.extract_strided_slice %51 {offsets = [48, 0], sizes = [16, 16], strides = [1, 1]} : vector<64x16xbf16> to vector<16x16xbf16>
    %62 = vector.extract_strided_slice %23 {offsets = [0, 24], sizes = [16, 8], strides = [1, 1]} : vector<16x32xbf16> to vector<16x8xbf16>
    %cst_28 = arith.constant dense<0.000000e+00> : vector<16x8xf32>
    %63 = tpu.matmul %61, %62, %cst_28 {dimension_numbers = #tpu.dot_dimension_numbers<[1], [0], [0], [1], [0, 0, 1, 1], [], []>} : vector<16x16xbf16>, vector<16x8xbf16>, vector<16x8xf32> -> vector<16x8xf32>
    %64 = tpu.concatenate %54, %57, %60, %63 in 1 : vector<16x8xf32>, vector<16x8xf32>, vector<16x8xf32>, vector<16x8xf32> -> vector<16x32xf32>
    %65 = arith.truncf %64 : vector<16x32xf32> to vector<16x32xbf16>
    %cst_29 = arith.constant dense<0.000000e+00> : vector<16x32xf32>
    %66 = tpu.matmul %65, %4, %cst_29 {dimension_numbers = #tpu.dot_dimension_numbers<[1], [0], [0], [1], [0, 0, 1, 1], [], []>} : vector<16x32xbf16>, vector<32x32xbf16>, vector<16x32xf32> -> vector<16x32xf32>
    %67 = vector.broadcast %8 : vector<1x32xf32> to vector<16x32xf32>
    %68 = arith.addf %66, %67 : vector<16x32xf32>
    %69 = arith.addf %0, %68 : vector<16x32xf32>
    %cst_30 = arith.constant dense<0.000000e+00> : vector<16xf32>
    %70 = vector.multi_reduction <add>, %69, %cst_30 [1] : vector<16x32xf32> to vector<16xf32>
    %71 = vector.shape_cast %70 : vector<16xf32> to vector<16x1xf32>
    %cst_31 = arith.constant 3.200000e+01 : f32
    %72 = vector.broadcast %cst_31 : f32 to vector<16x1xf32>
    %73 = arith.divf %71, %72 : vector<16x1xf32>
    %74 = vector.broadcast %73 : vector<16x1xf32> to vector<16x32xf32>
    %75 = arith.subf %69, %74 : vector<16x32xf32>
    %76 = arith.mulf %75, %75 : vector<16x32xf32>
    %cst_32 = arith.constant dense<0.000000e+00> : vector<16xf32>
    %77 = vector.multi_reduction <add>, %76, %cst_32 [1] : vector<16x32xf32> to vector<16xf32>
    %78 = vector.shape_cast %77 : vector<16xf32> to vector<16x1xf32>
    %cst_33 = arith.constant 3.200000e+01 : f32
    %79 = vector.broadcast %cst_33 : f32 to vector<16x1xf32>
    %80 = arith.divf %78, %79 : vector<16x1xf32>
    %81 = vector.broadcast %73 : vector<16x1xf32> to vector<16x32xf32>
    %82 = arith.subf %69, %81 : vector<16x32xf32>
    %cst_34 = arith.constant 9.99999997E-7 : f32
    %83 = vector.broadcast %cst_34 : f32 to vector<16x1xf32>
    %84 = arith.addf %80, %83 : vector<16x1xf32>
    %85 = math.rsqrt %84 : vector<16x1xf32>
    %86 = vector.broadcast %85 : vector<16x1xf32> to vector<16x32xf32>
    %87 = arith.mulf %82, %86 : vector<16x32xf32>
    %88 = vector.broadcast %9 : vector<1x32xf32> to vector<16x32xf32>
    %89 = arith.mulf %87, %88 : vector<16x32xf32>
    %90 = vector.broadcast %10 : vector<1x32xf32> to vector<16x32xf32>
    %91 = arith.addf %89, %90 : vector<16x32xf32>
    %92 = arith.truncf %91 : vector<16x32xf32> to vector<16x32xbf16>
    %cst_35 = arith.constant dense<0.000000e+00> : vector<16x64xf32>
    %93 = tpu.matmul %92, %5, %cst_35 {dimension_numbers = #tpu.dot_dimension_numbers<[1], [0], [0], [1], [0, 0, 1, 1], [], []>} : vector<16x32xbf16>, vector<32x64xbf16>, vector<16x64xf32> -> vector<16x64xf32>
    %94 = vector.broadcast %13 : vector<1x64xf32> to vector<16x64xf32>
    %95 = arith.addf %93, %94 : vector<16x64xf32>
    %cst_36 = arith.constant 0.000000e+00 : f32
    %96 = vector.broadcast %cst_36 : f32 to vector<16x64xf32>
    %97 = arith.maximumf %95, %96 : vector<16x64xf32>
    %98 = arith.truncf %97 : vector<16x64xf32> to vector<16x64xbf16>
    %cst_37 = arith.constant dense<0.000000e+00> : vector<16x32xf32>
    %99 = tpu.matmul %98, %6, %cst_37 {dimension_numbers = #tpu.dot_dimension_numbers<[1], [1], [0], [0], [0, 0, 1, 0], [], []>} : vector<16x64xbf16>, vector<32x64xbf16>, vector<16x32xf32> -> vector<16x32xf32>
    %100 = vector.broadcast %14 : vector<1x32xf32> to vector<16x32xf32>
    %101 = arith.addf %99, %100 : vector<16x32xf32>
    %102 = arith.addf %91, %101 : vector<16x32xf32>
    %cst_38 = arith.constant dense<0.000000e+00> : vector<16xf32>
    %103 = vector.multi_reduction <add>, %102, %cst_38 [1] : vector<16x32xf32> to vector<16xf32>
    %104 = vector.shape_cast %103 : vector<16xf32> to vector<16x1xf32>
    %cst_39 = arith.constant 3.200000e+01 : f32
    %105 = vector.broadcast %cst_39 : f32 to vector<16x1xf32>
    %106 = arith.divf %104, %105 : vector<16x1xf32>
    %107 = vector.broadcast %106 : vector<16x1xf32> to vector<16x32xf32>
    %108 = arith.subf %102, %107 : vector<16x32xf32>
    %109 = arith.mulf %108, %108 : vector<16x32xf32>
    %cst_40 = arith.constant dense<0.000000e+00> : vector<16xf32>
    %110 = vector.multi_reduction <add>, %109, %cst_40 [1] : vector<16x32xf32> to vector<16xf32>
    %111 = vector.shape_cast %110 : vector<16xf32> to vector<16x1xf32>
    %cst_41 = arith.constant 3.200000e+01 : f32
    %112 = vector.broadcast %cst_41 : f32 to vector<16x1xf32>
    %113 = arith.divf %111, %112 : vector<16x1xf32>
    %114 = vector.broadcast %106 : vector<16x1xf32> to vector<16x32xf32>
    %115 = arith.subf %102, %114 : vector<16x32xf32>
    %cst_42 = arith.constant 9.99999997E-7 : f32
    %116 = vector.broadcast %cst_42 : f32 to vector<16x1xf32>
    %117 = arith.addf %113, %116 : vector<16x1xf32>
    %118 = math.rsqrt %117 : vector<16x1xf32>
    %119 = vector.broadcast %118 : vector<16x1xf32> to vector<16x32xf32>
    %120 = arith.mulf %115, %119 : vector<16x32xf32>
    %121 = vector.broadcast %11 : vector<1x32xf32> to vector<16x32xf32>
    %122 = arith.mulf %120, %121 : vector<16x32xf32>
    %123 = vector.broadcast %12 : vector<1x32xf32> to vector<16x32xf32>
    %124 = arith.addf %122, %123 : vector<16x32xf32>
    %c0_43 = arith.constant 0 : index
    %c0_44 = arith.constant 0 : index
    %125 = vector.load %arg5[%c0_43, %c0_44] : memref<16x32xf32, #tpu.memory_space<vmem>>, vector<16x32xf32>
    tpu.vector_store %arg5[%c0_43, %c0_44], %124 {strides = array<i32>} : memref<16x32xf32, #tpu.memory_space<vmem>>, vector<16x32xf32>,
    return
  }
  func.func @transform_0(%arg0: i32) -> (i32, i32) {
    %c0_i32 = arith.constant 0 : i32
    %c0_i32_0 = arith.constant 0 : i32
    %c0_i32_1 = arith.constant 0 : i32
    return %c0_i32, %c0_i32_0 : i32, i32
  }
  func.func @transform_1(%arg0: i32) -> (i32, i32) {
    %c0_i32 = arith.constant 0 : i32
    %c0_i32_0 = arith.constant 0 : i32
    %c0_i32_1 = arith.constant 0 : i32
    return %c0_i32, %c0_i32_0 : i32, i32
  }
  func.func @transform_2(%arg0: i32) -> (i32, i32) {
    %c0_i32 = arith.constant 0 : i32
    %c0_i32_0 = arith.constant 0 : i32
    %c0_i32_1 = arith.constant 0 : i32
    return %c0_i32, %c0_i32_0 : i32, i32
  }
  func.func @transform_3(%arg0: i32) -> (i32, i32) {
    %c0_i32 = arith.constant 0 : i32
    %c0_i32_0 = arith.constant 0 : i32
    %c0_i32_1 = arith.constant 0 : i32
    return %c0_i32, %c0_i32_0 : i32, i32
  }
  func.func @transform_4(%arg0: i32) -> (i32, i32) {
    %c0_i32 = arith.constant 0 : i32
    %c0_i32_0 = arith.constant 0 : i32
    %c0_i32_1 = arith.constant 0 : i32
    return %c0_i32, %c0_i32_0 : i32, i32
  }
}

</mosaic_0001>

<llo_original>
// kernel: encoder_layer.1
$region0: #{encoder_layer.1}
  #allocation0 [shape = 'u32[]', space=smem, size = 0x4, offset = 0x4, fixed_abs, tag = 'smem constant byte address 0x4 - core index']
  #allocation1 [shape = 'u32[144,128]{1,0:T(1,128)}', space=vmem, size = 0x12000, scoped, tag = 'internal scratch']
  %s0 = inlined_call_operand.vmem [shape: f32[16,32], index: 0, kind: input, shape index: {}]
  %s1 = inlined_call_operand.vmem [shape: f32[16,16], index: 1, kind: input, shape index: {}]
  %s2 = inlined_call_operand.hbm [shape: bf16[32,512], index: 2, kind: input, shape index: {}]
  %s3 = inlined_call_operand.vmem [shape: f32[3,128], index: 3, kind: input, shape index: {}]
  %s4 = inlined_call_operand.hbm [shape: f32[16,32], index: 4, kind: output, shape index: {}]
  %s5 = sld [smem:[#allocation0]]
  $region30: #{encoder_layer.1} parent=0
    _
  %s7 = ssub.s32 1, %s5
  %s8 = scalar_select 0, %s7, %s5
  $region1: #{encoder_layer.1} parent=0
    #allocation2 [shape = 'u8[32768]{0}', space=vmem, size = 0x8000, scoped, tag = 'input window, operand 2, single buffered']
    #allocation3 [shape = 's32[1]{0}', space=sflag, size = 0x4, scoped, tag = 'scoped memory for encoder_layer.1']
    #allocation4 [shape = 's32[1]{0}', space=sflag, size = 0x4, scoped, tag = 'scoped memory for encoder_layer.1']
    #allocation5 [shape = 'u8[8192]{0}', space=vmem, size = 0x2000, scoped, tag = 'output window, operand 0, single buffered']
    %9 = vsyncpa [#allocation3], 0
    %10 = vsyncpa [#allocation4], 0
    // Predicated region
    $region2: #{encoder_layer.1} parent=1 // pred_check
      _
    $region3: #{encoder_layer.1} parent=1 // pred_check_branch
      %12 = sbr.rel (0) target = $region5
    $region4: #{encoder_layer.1} parent=1 // pred_region
      _
    $region5: #{encoder_layer.1} parent=1 // pred_fallthru
      _
    // Predicated region
    $region6: #{encoder_layer.1} parent=1 // pred_check
      _
    $region7: #{encoder_layer.1} parent=1 // pred_check_branch
      %14 = sbr.rel (0) target = $region9
    $region8: #{encoder_layer.1} parent=1 // pred_region
      _
    $region9: #{encoder_layer.1} parent=1 // pred_fallthru
      _
    // Predicated region
    $region10: #{encoder_layer.1} parent=1 // pred_check
      _
    $region11: #{encoder_layer.1} parent=1 // pred_check_branch
      %16 = sbr.rel (0) target = $region13
    $region12: #{encoder_layer.1} parent=1 // pred_region
      %s18 = ssub.s32 1024, 1024
      %19 = vsyncadd [#allocation3], %s18
      %s20 = sshll.u32 [#allocation2], 4
      %s21 = int_to_ptr.vmem [resolvable:$true] %s20
      %26 = dma.hbm_to_vmem [thread:$0]  %s2, 1024, %s21, [#allocation3], 256, 256, 16
    $region13: #{encoder_layer.1} parent=1 // pred_fallthru
      _
    // Predicated region
    $region14: #{encoder_layer.1} parent=1 // pred_check
      _
    $region15: #{encoder_layer.1} parent=1 // pred_check_branch
      %28 = sbr.rel (0) target = $region17
    $region16: #{encoder_layer.1} parent=1 // pred_region
      _
    $region17: #{encoder_layer.1} parent=1 // pred_fallthru
      _
    // Predicated region
    $region18: #{encoder_layer.1} parent=1 // pred_check
      _
    $region19: #{encoder_layer.1} parent=1 // pred_check_branch
      %30 = sbr.rel (0) target = $region21
    $region20: #{encoder_layer.1} parent=1 // pred_region
      %31 = dma.done [#allocation3], 1024
    $region21: #{encoder_layer.1} parent=1 // pred_fallthru
      _
    %v33 = vld [vmem:[%s0] sm:$0xff]
    %v34 = vld [vmem:[%s0 + $0x8] sm:$0xff]
    %v35 = vpack.c.bf16 %v34, %v33
    %v36 = vld [vmem:[%s1] sm:$0xff]
    %v37 = vld [vmem:[%s1 + $0x8] sm:$0xff]
    %v38 = vld [vmem:[#allocation2] sm:$0xf]
    %v39 = vld [vmem:[#allocation2 + $0x10] sm:$0xf]
    %v40 = vld [vmem:[#allocation2 + $0x20] sm:$0xf]
    %v41 = vld [vmem:[#allocation2 + $0x30] sm:$0xf]
    %v42 = vld [vmem:[#allocation2 + $0x4] sm:$0xf]
    %v43 = vld [vmem:[#allocation2 + $0x14] sm:$0xf]
    %v44 = vld [vmem:[#allocation2 + $0x24] sm:$0xf]
    %v45 = vld [vmem:[#allocation2 + $0x34] sm:$0xf]
    %v46 = vld [vmem:[#allocation2 + $0x8] sm:$0xf]
    %v47 = vld [vmem:[#allocation2 + $0x18] sm:$0xf]
    %v48 = vld [vmem:[#allocation2 + $0x28] sm:$0xf]
    %v49 = vld [vmem:[#allocation2 + $0x38] sm:$0xf]
    %v50 = vld [vmem:[#allocation2 + $0xc] sm:$0xf]
    %v51 = vld [vmem:[#allocation2 + $0x1c] sm:$0xf]
    %v52 = vld [vmem:[#allocation2 + $0x2c] sm:$0xf]
    %v53 = vld [vmem:[#allocation2 + $0x3c] sm:$0xf]
    %v54 = vld [vmem:[%s3] sm:$0x1]
    %v55 = vld [vmem:[%s3 + $0x1] sm:$0x1]
    %v56 = vld [vmem:[%s3 + $0x2] sm:$0x1]
    %v57 = vlaneseq
    %v58 = vshrl.u32 %v57, 7
    %v59 = vsub.s32 0, %v58
    %v60 = vrot.slane %v54, %v59
    %v65 = vunpack.c.l.b16 %v38
    %v66 = vunpack.c.l.b16 %v39
    %v67 = vunpack.c.l.b16 %v40
    %v68 = vunpack.c.l.b16 %v41
    %v69 = vpack.c.b16 %v66, %v65
    %v70 = vpack.c.b16 %v68, %v67
    %vm73 = vcmask 261120
    %v75 = vsel %vm73, %v35, 0
    %77 = vmatprep.subr.bf16.mxu0 0
    %78 = vmatpush1.bf16.msra.mxu0 %v69
    %79 = vmatprep.subr.bf16.mxu0 0
    %80 = vmatpush1.bf16.msra.mxu0 %v70
    %81 = vmatprep.subr.bf16.mxu0 0
    %82 = vmatpush1.bf16.msra.mxu0 0
    %83 = vmatprep.subr.bf16.mxu0 0
    %84 = vmatpush1.bf16.msra.mxu0 0
    %85 = vmatprep.subr.bf16.mxu0 0
    %86 = vmatpush1.bf16.msra.mxu0 0
    %87 = vmatprep.subr.bf16.mxu0 0
    %88 = vmatpush1.bf16.msra.mxu0 0
    %89 = vmatprep.subr.bf16.mxu0 0
    %90 = vmatpush1.bf16.msra.mxu0 0
    %91 = vmatprep.subr.bf16.mxu0 0
    %92 = vmatpush1.bf16.msra.mxu0 0
    %93 = vmatprep.subr.bf16.mxu0 0
    %94 = vmatpush1.bf16.msra.mxu0 0
    %95 = vmatprep.subr.bf16.mxu0 0
    %96 = vmatpush1.bf16.msra.mxu0 0
    %97 = vmatprep.subr.bf16.mxu0 0
    %98 = vmatpush1.bf16.msra.mxu0 0
    %99 = vmatprep.subr.bf16.mxu0 0
    %100 = vmatpush1.bf16.msra.mxu0 0
    %101 = vmatprep.subr.bf16.mxu0 0
    %102 = vmatpush1.bf16.msra.mxu0 0
    %103 = vmatprep.subr.bf16.mxu0 0
    %104 = vmatpush1.bf16.msra.mxu0 0
    %105 = vmatprep.subr.bf16.mxu0 0
    %106 = vmatpush1.bf16.msra.mxu0 0
    %107 = vmatprep.subr.bf16.mxu0 0
    %108 = vmatpush1.bf16.msra.mxu0 0
    %109 = vmatprep.mubr.bf16.mxu0 0
    %110 = vmatmul.mubr.bf16.gmra.mrb[0].mxu0 %v75
    %v111 = vpop.f32.mrb[0].mxu0
    %v112 = vadd.f32 %v60, %v111
    %v113 = vpop.f32.mrb[0].mxu0
    %v114 = vpop.f32.mrb[0].mxu0
    %v115 = vadd.f32 %v60, %v114
    %v116 = vpop.f32.mrb[0].mxu0
    %117 = vdwg.mxu0
    %v118 = vpack.c.bf16 %v115, %v112
    %120 = vrot.lane.b32.xlu0 %v118, 96
    %v121 = vpop.permute.xlu0 %120
    %vm122 = vcmask 64512
    %v124 = vsel %vm122, %v118, 0
    %v127 = vsel %vm122, %v121, 0
    %129 = vmatprep.subr.bf16.mxu0 0
    %130 = vmatpush1.bf16.xpose.msra.mxu0 %v127
    %131 = vmatprep.subr.bf16.mxu0 0
    %132 = vmatpush1.bf16.xpose.msra.mxu0 0
    %133 = vmatprep.subr.bf16.mxu0 0
    %134 = vmatpush1.bf16.xpose.msra.mxu0 0
    %135 = vmatprep.subr.bf16.mxu0 0
    %136 = vmatpush1.bf16.xpose.msra.mxu0 0
    %137 = vmatprep.subr.bf16.mxu0 0
    %138 = vmatpush1.bf16.xpose.msra.mxu0 0
    %139 = vmatprep.subr.bf16.mxu0 0
    %140 = vmatpush1.bf16.xpose.msra.mxu0 0
    %141 = vmatprep.subr.bf16.mxu0 0
    %142 = vmatpush1.bf16.xpose.msra.mxu0 0
    %143 = vmatprep.subr.bf16.mxu0 0
    %144 = vmatpush1.bf16.xpose.msra.mxu0 0
    %145 = vmatprep.subr.bf16.mxu0 0
    %146 = vmatpush1.bf16.xpose.msra.mxu0 0
    %147 = vmatprep.subr.bf16.mxu0 0
    %148 = vmatpush1.bf16.xpose.msra.mxu0 0
    %149 = vmatprep.subr.bf16.mxu0 0
    %150 = vmatpush1.bf16.xpose.msra.mxu0 0
    %151 = vmatprep.subr.bf16.mxu0 0
    %152 = vmatpush1.bf16.xpose.msra.mxu0 0
    %153 = vmatprep.subr.bf16.mxu0 0
    %154 = vmatpush1.bf16.xpose.msra.mxu0 0
    %155 = vmatprep.subr.bf16.mxu0 0
    %156 = vmatpush1.bf16.xpose.msra.mxu0 0
    %157 = vmatprep.subr.bf16.mxu0 0
    %158 = vmatpush1.bf16.xpose.msra.mxu0 0
    %159 = vmatprep.subr.bf16.mxu0 0
    %160 = vmatpush1.bf16.xpose.msra.mxu0 0
    %161 = vmatprep.mubr.bf16.mxu0 0
    %162 = vmatmul.mubr.bf16.gmra.mrb[0].mxu0 %v124
    %v163 = vpop.f32.mrb[0].mxu0
    %v164 = vadd.f32 %v36, %v163
    %v165 = vpop.f32.mrb[0].mxu0
    %v166 = vpop.f32.mrb[0].mxu0
    %v167 = vadd.f32 %v37, %v166
    %v168 = vpop.f32.mrb[0].mxu0
    %169 = vdwg.mxu0
    %170 = vrot.lane.b32.xlu0 %v118, 120
    %v171 = vpop.permute.xlu0 %170
    %172 = vrot.lane.b32.xlu0 %v118, 88
    %v173 = vpop.permute.xlu0 %172
    %v175 = vsel %vm122, %v171, 0
    %v178 = vsel %vm122, %v173, 0
    %180 = vmatprep.subr.bf16.mxu0 0
    %181 = vmatpush1.bf16.xpose.msra.mxu0 %v178
    %182 = vmatprep.subr.bf16.mxu0 0
    %183 = vmatpush1.bf16.xpose.msra.mxu0 0
    %184 = vmatprep.subr.bf16.mxu0 0
    %185 = vmatpush1.bf16.xpose.msra.mxu0 0
    %186 = vmatprep.subr.bf16.mxu0 0
    %187 = vmatpush1.bf16.xpose.msra.mxu0 0
    %188 = vmatprep.subr.bf16.mxu0 0
    %189 = vmatpush1.bf16.xpose.msra.mxu0 0
    %190 = vmatprep.subr.bf16.mxu0 0
    %191 = vmatpush1.bf16.xpose.msra.mxu0 0
    %192 = vmatprep.subr.bf16.mxu0 0
    %193 = vmatpush1.bf16.xpose.msra.mxu0 0
    %194 = vmatprep.subr.bf16.mxu0 0
    %195 = vmatpush1.bf16.xpose.msra.mxu0 0
    %196 = vmatprep.subr.bf16.mxu0 0
    %197 = vmatpush1.bf16.xpose.msra.mxu0 0
    %198 = vmatprep.subr.bf16.mxu0 0
    %199 = vmatpush1.bf16.xpose.msra.mxu0 0
    %200 = vmatprep.subr.bf16.mxu0 0
    %201 = vmatpush1.bf16.xpose.msra.mxu0 0
    %202 = vmatprep.subr.bf16.mxu0 0
    %203 = vmatpush1.bf16.xpose.msra.mxu0 0
    %204 = vmatprep.subr.bf16.mxu0 0
    %205 = vmatpush1.bf16.xpose.msra.mxu0 0
    %206 = vmatprep.subr.bf16.mxu0 0
    %207 = vmatpush1.bf16.xpose.msra.mxu0 0
    %208 = vmatprep.subr.bf16.mxu0 0
    %209 = vmatpush1.bf16.xpose.msra.mxu0 0
    %210 = vmatprep.subr.bf16.mxu0 0
    %211 = vmatpush1.bf16.xpose.msra.mxu0 0
    %212 = vmatprep.mubr.bf16.mxu0 0
    %213 = vmatmul.mubr.bf16.gmra.mrb[0].mxu0 %v175
    %v214 = vpop.f32.mrb[0].mxu0
    %v215 = vadd.f32 %v36, %v214
    %v216 = vpop.f32.mrb[0].mxu0
    %v217 = vpop.f32.mrb[0].mxu0
    %v218 = vadd.f32 %v37, %v217
    %v219 = vpop.f32.mrb[0].mxu0
    %220 = vdwg.mxu0
    %221 = vrot.lane.b32.xlu0 %v118, 112
    %v222 = vpop.permute.xlu0 %221
    %223 = vrot.lane.b32.xlu0 %v118, 80
    %v224 = vpop.permute.xlu0 %223
    %v226 = vsel %vm122, %v222, 0
    %v229 = vsel %vm122, %v224, 0
    %231 = vmatprep.subr.bf16.mxu0 0
    %232 = vmatpush1.bf16.xpose.msra.mxu0 %v229
    %233 = vmatprep.subr.bf16.mxu0 0
    %234 = vmatpush1.bf16.xpose.msra.mxu0 0
    %235 = vmatprep.subr.bf16.mxu0 0
    %236 = vmatpush1.bf16.xpose.msra.mxu0 0
    %237 = vmatprep.subr.bf16.mxu0 0
    %238 = vmatpush1.bf16.xpose.msra.mxu0 0
    %239 = vmatprep.subr.bf16.mxu0 0
    %240 = vmatpush1.bf16.xpose.msra.mxu0 0
    %241 = vmatprep.subr.bf16.mxu0 0
    %242 = vmatpush1.bf16.xpose.msra.mxu0 0
    %243 = vmatprep.subr.bf16.mxu0 0
    %244 = vmatpush1.bf16.xpose.msra.mxu0 0
    %245 = vmatprep.subr.bf16.mxu0 0
    %246 = vmatpush1.bf16.xpose.msra.mxu0 0
    %247 = vmatprep.subr.bf16.mxu0 0
    %248 = vmatpush1.bf16.xpose.msra.mxu0 0
    %249 = vmatprep.subr.bf16.mxu0 0
    %250 = vmatpush1.bf16.xpose.msra.mxu0 0
    %251 = vmatprep.subr.bf16.mxu0 0
    %252 = vmatpush1.bf16.xpose.msra.mxu0 0
    %253 = vmatprep.subr.bf16.mxu0 0
    %254 = vmatpush1.bf16.xpose.msra.mxu0 0
    %255 = vmatprep.subr.bf16.mxu0 0
    %256 = vmatpush1.bf16.xpose.msra.mxu0 0
    %257 = vmatprep.subr.bf16.mxu0 0
    %258 = vmatpush1.bf16.xpose.msra.mxu0 0
    %259 = vmatprep.subr.bf16.mxu0 0
    %260 = vmatpush1.bf16.xpose.msra.mxu0 0
    %261 = vmatprep.subr.bf16.mxu0 0
    %262 = vmatpush1.bf16.xpose.msra.mxu0 0
    %263 = vmatprep.mubr.bf16.mxu0 0
    %264 = vmatmul.mubr.bf16.gmra.mrb[0].mxu0 %v226
    %v265 = vpop.f32.mrb[0].mxu0
    %v266 = vadd.f32 %v36, %v265
    %v267 = vpop.f32.mrb[0].mxu0
    %v268 = vpop.f32.mrb[0].mxu0
    %v269 = vadd.f32 %v37, %v268
    %v270 = vpop.f32.mrb[0].mxu0
    %271 = vdwg.mxu0
    %272 = vrot.lane.b32.xlu0 %v118, 104
    %v273 = vpop.permute.xlu0 %272
    %274 = vrot.lane.b32.xlu0 %v118, 72
    %v275 = vpop.permute.xlu0 %274
    %v277 = vsel %vm122, %v273, 0
    %v280 = vsel %vm122, %v275, 0
    %282 = vmatprep.subr.bf16.mxu0 0
    %283 = vmatpush1.bf16.xpose.msra.mxu0 %v280
    %284 = vmatprep.subr.bf16.mxu0 0
    %285 = vmatpush1.bf16.xpose.msra.mxu0 0
    %286 = vmatprep.subr.bf16.mxu0 0
    %287 = vmatpush1.bf16.xpose.msra.mxu0 0
    %288 = vmatprep.subr.bf16.mxu0 0
    %289 = vmatpush1.bf16.xpose.msra.mxu0 0
    %290 = vmatprep.subr.bf16.mxu0 0
    %291 = vmatpush1.bf16.xpose.msra.mxu0 0
    %292 = vmatprep.subr.bf16.mxu0 0
    %293 = vmatpush1.bf16.xpose.msra.mxu0 0
    %294 = vmatprep.subr.bf16.mxu0 0
    %295 = vmatpush1.bf16.xpose.msra.mxu0 0
    %296 = vmatprep.subr.bf16.mxu0 0
    %297 = vmatpush1.bf16.xpose.msra.mxu0 0
    %298 = vmatprep.subr.bf16.mxu0 0
    %299 = vmatpush1.bf16.xpose.msra.mxu0 0
    %300 = vmatprep.subr.bf16.mxu0 0
    %301 = vmatpush1.bf16.xpose.msra.mxu0 0
    %302 = vmatprep.subr.bf16.mxu0 0
    %303 = vmatpush1.bf16.xpose.msra.mxu0 0
    %304 = vmatprep.subr.bf16.mxu0 0
    %305 = vmatpush1.bf16.xpose.msra.mxu0 0
    %306 = vmatprep.subr.bf16.mxu0 0
    %307 = vmatpush1.bf16.xpose.msra.mxu0 0
    %308 = vmatprep.subr.bf16.mxu0 0
    %309 = vmatpush1.bf16.xpose.msra.mxu0 0
    %310 = vmatprep.subr.bf16.mxu0 0
    %311 = vmatpush1.bf16.xpose.msra.mxu0 0
    %312 = vmatprep.subr.bf16.mxu0 0
    %313 = vmatpush1.bf16.xpose.msra.mxu0 0
    %314 = vmatprep.mubr.bf16.mxu0 0
    %315 = vmatmul.mubr.bf16.gmra.mrb[0].mxu0 %v277
    %v316 = vpop.f32.mrb[0].mxu0
    %v317 = vadd.f32 %v36, %v316
    %v318 = vpop.f32.mrb[0].mxu0
    %v319 = vpop.f32.mrb[0].mxu0
    %v320 = vadd.f32 %v37, %v319
    %v321 = vpop.f32.mrb[0].mxu0
    %322 = vdwg.mxu0
    %vm323 = vcmask 130048
    %v324 = vsel %vm323, %v164, -inf
    %325 = vmax.xlane.f32.xlu0 %v324
    %v326 = vpop.xlane.xlu0 %325
    %v327 = vsel %vm323, %v167, -inf
    %328 = vmax.xlane.f32.xlu0 %v327
    %v329 = vpop.xlane.xlu0 %328
    %v330 = vsel %vm323, %v215, -inf
    %331 = vmax.xlane.f32.xlu0 %v330
    %v332 = vpop.xlane.xlu0 %331
    %v333 = vsel %vm323, %v218, -inf
    %334 = vmax.xlane.f32.xlu0 %v333
    %v335 = vpop.xlane.xlu0 %334
    %v336 = vsel %vm323, %v266, -inf
    %337 = vmax.xlane.f32.xlu0 %v336
    %v338 = vpop.xlane.xlu0 %337
    %v339 = vsel %vm323, %v269, -inf
    %340 = vmax.xlane.f32.xlu0 %v339
    %v341 = vpop.xlane.xlu0 %340
    %v342 = vsel %vm323, %v317, -inf
    %343 = vmax.xlane.f32.xlu0 %v342
    %v344 = vpop.xlane.xlu0 %343
    %v345 = vsel %vm323, %v320, -inf
    %346 = vmax.xlane.f32.xlu0 %v345
    %v347 = vpop.xlane.xlu0 %346
    %v348 = vsub.f32 %v164, %v326
    %v349 = vsub.f32 %v167, %v329
    %v350 = vsub.f32 %v215, %v332
    %v351 = vsub.f32 %v218, %v335
    %v352 = vsub.f32 %v266, %v338
    %v353 = vsub.f32 %v269, %v341
    %v354 = vsub.f32 %v317, %v344
    %v355 = vsub.f32 %v320, %v347
    %v356 = vmul.f32 %v348, 1.442695
    %v357 = vpow.pop %v356
    %v358 = vmul.f32 %v349, 1.442695
    %v359 = vpow.pop %v358
    %v360 = vmul.f32 %v350, 1.442695
    %v361 = vpow.pop %v360
    %v362 = vmul.f32 %v351, 1.442695
    %v363 = vpow.pop %v362
    %v364 = vmul.f32 %v352, 1.442695
    %v365 = vpow.pop %v364
    %v366 = vmul.f32 %v353, 1.442695
    %v367 = vpow.pop %v366
    %v368 = vmul.f32 %v354, 1.442695
    %v369 = vpow.pop %v368
    %v370 = vmul.f32 %v355, 1.442695
    %v371 = vpow.pop %v370
    %v372 = vsel %vm323, %v357, 0.0
    %373 = vadd.xlane.f32.xlu0 %v372
    %v374 = vpop.xlane.xlu0 %373
    %v375 = vsel %vm323, %v359, 0.0
    %376 = vadd.xlane.f32.xlu0 %v375
    %v377 = vpop.xlane.xlu0 %376
    %v378 = vsel %vm323, %v361, 0.0
    %379 = vadd.xlane.f32.xlu0 %v378
    %v380 = vpop.xlane.xlu0 %379
    %v381 = vsel %vm323, %v363, 0.0
    %382 = vadd.xlane.f32.xlu0 %v381
    %v383 = vpop.xlane.xlu0 %382
    %v384 = vsel %vm323, %v365, 0.0
    %385 = vadd.xlane.f32.xlu0 %v384
    %v386 = vpop.xlane.xlu0 %385
    %v387 = vsel %vm323, %v367, 0.0
    %388 = vadd.xlane.f32.xlu0 %v387
    %v389 = vpop.xlane.xlu0 %388
    %v390 = vsel %vm323, %v369, 0.0
    %391 = vadd.xlane.f32.xlu0 %v390
    %v392 = vpop.xlane.xlu0 %391
    %v393 = vsel %vm323, %v371, 0.0
    %394 = vadd.xlane.f32.xlu0 %v393
    %v395 = vpop.xlane.xlu0 %394
    %v396 = vrcp.pop %v374
    %v397 = vrcp.pop %v377
    %v398 = vrcp.pop %v380
    %v399 = vrcp.pop %v383
    %v400 = vrcp.pop %v386
    %v401 = vrcp.pop %v389
    %v402 = vrcp.pop %v392
    %v403 = vrcp.pop %v395
    %v404 = vmul.f32 %v357, %v396
    %v405 = vmul.f32 %v359, %v397
    %v406 = vmul.f32 %v361, %v398
    %v407 = vmul.f32 %v363, %v399
    %v408 = vmul.f32 %v365, %v400
    %v409 = vmul.f32 %v367, %v401
    %v410 = vmul.f32 %v369, %v402
    %v411 = vmul.f32 %v371, %v403
    %v412 = vpack.c.bf16 %v405, %v404
    %v413 = vpack.c.bf16 %v407, %v406
    %v414 = vpack.c.bf16 %v409, %v408
    %v415 = vpack.c.bf16 %v411, %v410
    %416 = vrot.lane.b32.xlu0 %v118, 64
    %v417 = vpop.permute.xlu0 %416
    %v420 = vsel %vm323, %v412, 0
    %422 = vmatprep.subr.bf16.mxu0 0
    %423 = vmatpush1.bf16.msra.mxu0 %v417
    %424 = vmatprep.subr.bf16.mxu0 0
    %425 = vmatpush1.bf16.msra.mxu0 0
    %426 = vmatprep.subr.bf16.mxu0 0
    %427 = vmatpush1.bf16.msra.mxu0 0
    %428 = vmatprep.subr.bf16.mxu0 0
    %429 = vmatpush1.bf16.msra.mxu0 0
    %430 = vmatprep.subr.bf16.mxu0 0
    %431 = vmatpush1.bf16.msra.mxu0 0
    %432 = vmatprep.subr.bf16.mxu0 0
    %433 = vmatpush1.bf16.msra.mxu0 0
    %434 = vmatprep.subr.bf16.mxu0 0
    %435 = vmatpush1.bf16.msra.mxu0 0
    %436 = vmatprep.subr.bf16.mxu0 0
    %437 = vmatpush1.bf16.msra.mxu0 0
    %438 = vmatprep.subr.bf16.mxu0 0
    %439 = vmatpush1.bf16.msra.mxu0 0
    %440 = vmatprep.subr.bf16.mxu0 0
    %441 = vmatpush1.bf16.msra.mxu0 0
    %442 = vmatprep.subr.bf16.mxu0 0
    %443 = vmatpush1.bf16.msra.mxu0 0
    %444 = vmatprep.subr.bf16.mxu0 0
    %445 = vmatpush1.bf16.msra.mxu0 0
    %446 = vmatprep.subr.bf16.mxu0 0
    %447 = vmatpush1.bf16.msra.mxu0 0
    %448 = vmatprep.subr.bf16.mxu0 0
    %449 = vmatpush1.bf16.msra.mxu0 0
    %450 = vmatprep.subr.bf16.mxu0 0
    %451 = vmatpush1.bf16.msra.mxu0 0
    %452 = vmatprep.subr.bf16.mxu0 0
    %453 = vmatpush1.bf16.msra.mxu0 0
    %454 = vmatprep.mubr.bf16.mxu0 0
    %455 = vmatmul.mubr.bf16.gmra.mrb[0].mxu0 %v420
    %v456 = vpop.f32.mrb[0].mxu0
    %v457 = vadd.f32 0.0, %v456
    %v458 = vpop.f32.mrb[0].mxu0
    %v459 = vpop.f32.mrb[0].mxu0
    %v460 = vadd.f32 0.0, %v459
    %v461 = vpop.f32.mrb[0].mxu0
    %462 = vdwg.mxu0
    %463 = vrot.lane.b32.xlu0 %v118, 56
    %v464 = vpop.permute.xlu0 %463
    %v467 = vsel %vm323, %v413, 0
    %469 = vmatprep.subr.bf16.mxu0 0
    %470 = vmatpush1.bf16.msra.mxu0 %v464
    %471 = vmatprep.subr.bf16.mxu0 0
    %472 = vmatpush1.bf16.msra.mxu0 0
    %473 = vmatprep.subr.bf16.mxu0 0
    %474 = vmatpush1.bf16.msra.mxu0 0
    %475 = vmatprep.subr.bf16.mxu0 0
    %476 = vmatpush1.bf16.msra.mxu0 0
    %477 = vmatprep.subr.bf16.mxu0 0
    %478 = vmatpush1.bf16.msra.mxu0 0
    %479 = vmatprep.subr.bf16.mxu0 0
    %480 = vmatpush1.bf16.msra.mxu0 0
    %481 = vmatprep.subr.bf16.mxu0 0
    %482 = vmatpush1.bf16.msra.mxu0 0
    %483 = vmatprep.subr.bf16.mxu0 0
    %484 = vmatpush1.bf16.msra.mxu0 0
    %485 = vmatprep.subr.bf16.mxu0 0
    %486 = vmatpush1.bf16.msra.mxu0 0
    %487 = vmatprep.subr.bf16.mxu0 0
    %488 = vmatpush1.bf16.msra.mxu0 0
    %489 = vmatprep.subr.bf16.mxu0 0
    %490 = vmatpush1.bf16.msra.mxu0 0
    %491 = vmatprep.subr.bf16.mxu0 0
    %492 = vmatpush1.bf16.msra.mxu0 0
    %493 = vmatprep.subr.bf16.mxu0 0
    %494 = vmatpush1.bf16.msra.mxu0 0
    %495 = vmatprep.subr.bf16.mxu0 0
    %496 = vmatpush1.bf16.msra.mxu0 0
    %497 = vmatprep.subr.bf16.mxu0 0
    %498 = vmatpush1.bf16.msra.mxu0 0
    %499 = vmatprep.subr.bf16.mxu0 0
    %500 = vmatpush1.bf16.msra.mxu0 0
    %501 = vmatprep.mubr.bf16.mxu0 0
    %502 = vmatmul.mubr.bf16.gmra.mrb[0].mxu0 %v467
    %v503 = vpop.f32.mrb[0].mxu0
    %v504 = vadd.f32 0.0, %v503
    %v505 = vpop.f32.mrb[0].mxu0
    %v506 = vpop.f32.mrb[0].mxu0
    %v507 = vadd.f32 0.0, %v506
    %v508 = vpop.f32.mrb[0].mxu0
    %509 = vdwg.mxu0
    %510 = vrot.lane.b32.xlu0 %v118, 48
    %v511 = vpop.permute.xlu0 %510
    %v514 = vsel %vm323, %v414, 0
    %516 = vmatprep.subr.bf16.mxu0 0
    %517 = vmatpush1.bf16.msra.mxu0 %v511
    %518 = vmatprep.subr.bf16.mxu0 0
    %519 = vmatpush1.bf16.msra.mxu0 0
    %520 = vmatprep.subr.bf16.mxu0 0
    %521 = vmatpush1.bf16.msra.mxu0 0
    %522 = vmatprep.subr.bf16.mxu0 0
    %523 = vmatpush1.bf16.msra.mxu0 0
    %524 = vmatprep.subr.bf16.mxu0 0
    %525 = vmatpush1.bf16.msra.mxu0 0
    %526 = vmatprep.subr.bf16.mxu0 0
    %527 = vmatpush1.bf16.msra.mxu0 0
    %528 = vmatprep.subr.bf16.mxu0 0
    %529 = vmatpush1.bf16.msra.mxu0 0
    %530 = vmatprep.subr.bf16.mxu0 0
    %531 = vmatpush1.bf16.msra.mxu0 0
    %532 = vmatprep.subr.bf16.mxu0 0
    %533 = vmatpush1.bf16.msra.mxu0 0
    %534 = vmatprep.subr.bf16.mxu0 0
    %535 = vmatpush1.bf16.msra.mxu0 0
    %536 = vmatprep.subr.bf16.mxu0 0
    %537 = vmatpush1.bf16.msra.mxu0 0
    %538 = vmatprep.subr.bf16.mxu0 0
    %539 = vmatpush1.bf16.msra.mxu0 0
    %540 = vmatprep.subr.bf16.mxu0 0
    %541 = vmatpush1.bf16.msra.mxu0 0
    %542 = vmatprep.subr.bf16.mxu0 0
    %543 = vmatpush1.bf16.msra.mxu0 0
    %544 = vmatprep.subr.bf16.mxu0 0
    %545 = vmatpush1.bf16.msra.mxu0 0
    %546 = vmatprep.subr.bf16.mxu0 0
    %547 = vmatpush1.bf16.msra.mxu0 0
    %548 = vmatprep.mubr.bf16.mxu0 0
    %549 = vmatmul.mubr.bf16.gmra.mrb[0].mxu0 %v514
    %v550 = vpop.f32.mrb[0].mxu0
    %v551 = vadd.f32 0.0, %v550
    %v552 = vpop.f32.mrb[0].mxu0
    %v553 = vpop.f32.mrb[0].mxu0
    %v554 = vadd.f32 0.0, %v553
    %v555 = vpop.f32.mrb[0].mxu0
    %556 = vdwg.mxu0
    %557 = vrot.lane.b32.xlu0 %v118, 40
    %v558 = vpop.permute.xlu0 %557
    %v561 = vsel %vm323, %v415, 0
    %563 = vmatprep.subr.bf16.mxu0 0
    %564 = vmatpush1.bf16.msra.mxu0 %v558
    %565 = vmatprep.subr.bf16.mxu0 0
    %566 = vmatpush1.bf16.msra.mxu0 0
    %567 = vmatprep.subr.bf16.mxu0 0
    %568 = vmatpush1.bf16.msra.mxu0 0
    %569 = vmatprep.subr.bf16.mxu0 0
    %570 = vmatpush1.bf16.msra.mxu0 0
    %571 = vmatprep.subr.bf16.mxu0 0
    %572 = vmatpush1.bf16.msra.mxu0 0
    %573 = vmatprep.subr.bf16.mxu0 0
    %574 = vmatpush1.bf16.msra.mxu0 0
    %575 = vmatprep.subr.bf16.mxu0 0
    %576 = vmatpush1.bf16.msra.mxu0 0
    %577 = vmatprep.subr.bf16.mxu0 0
    %578 = vmatpush1.bf16.msra.mxu0 0
    %579 = vmatprep.subr.bf16.mxu0 0
    %580 = vmatpush1.bf16.msra.mxu0 0
    %581 = vmatprep.subr.bf16.mxu0 0
    %582 = vmatpush1.bf16.msra.mxu0 0
    %583 = vmatprep.subr.bf16.mxu0 0
    %584 = vmatpush1.bf16.msra.mxu0 0
    %585 = vmatprep.subr.bf16.mxu0 0
    %586 = vmatpush1.bf16.msra.mxu0 0
    %587 = vmatprep.subr.bf16.mxu0 0
    %588 = vmatpush1.bf16.msra.mxu0 0
    %589 = vmatprep.subr.bf16.mxu0 0
    %590 = vmatpush1.bf16.msra.mxu0 0
    %591 = vmatprep.subr.bf16.mxu0 0
    %592 = vmatpush1.bf16.msra.mxu0 0
    %593 = vmatprep.subr.bf16.mxu0 0
    %594 = vmatpush1.bf16.msra.mxu0 0
    %595 = vmatprep.mubr.bf16.mxu0 0
    %596 = vmatmul.mubr.bf16.gmra.mrb[0].mxu0 %v561
    %v597 = vpop.f32.mrb[0].mxu0
    %v598 = vadd.f32 0.0, %v597
    %v599 = vpop.f32.mrb[0].mxu0
    %v600 = vpop.f32.mrb[0].mxu0
    %v601 = vadd.f32 0.0, %v600
    %v602 = vpop.f32.mrb[0].mxu0
    %603 = vdwg.mxu0
    %606 = vrot.lane.b32.xlu0 %v504, 8
    %v607 = vpop.permute.xlu0 %606
    %608 = vrot.lane.b32.xlu0 %v507, 8
    %v609 = vpop.permute.xlu0 %608
    %614 = vrot.lane.b32.xlu0 %v551, 16
    %v615 = vpop.permute.xlu0 %614
    %616 = vrot.lane.b32.xlu0 %v554, 16
    %v617 = vpop.permute.xlu0 %616
    %622 = vrot.lane.b32.xlu0 %v598, 24
    %v623 = vpop.permute.xlu0 %622
    %624 = vrot.lane.b32.xlu0 %v601, 24
    %v625 = vpop.permute.xlu0 %624
    %v628 = vsel %vm122, %v457, %v607
    %v629 = vsel %vm122, %v460, %v609
    %v630 = vsel %vm323, %v628, %v615
    %v631 = vsel %vm323, %v629, %v617
    %vm632 = vcmask 195584
    %v633 = vsel %vm632, %v630, %v623
    %v634 = vsel %vm632, %v631, %v625
    %v635 = vpack.c.bf16 %v634, %v633
    %v640 = vunpack.c.l.b16 %v42
    %v641 = vunpack.c.l.b16 %v43
    %v642 = vunpack.c.l.b16 %v44
    %v643 = vunpack.c.l.b16 %v45
    %v644 = vpack.c.b16 %v641, %v640
    %v645 = vpack.c.b16 %v643, %v642
    %649 = vrot.lane.b32.xlu0 %v60, 32
    %v650 = vpop.permute.xlu0 %649
    %v653 = vsel %vm73, %v635, 0
    %655 = vmatprep.subr.bf16.mxu0 0
    %656 = vmatpush1.bf16.msra.mxu0 %v644
    %657 = vmatprep.subr.bf16.mxu0 0
    %658 = vmatpush1.bf16.msra.mxu0 %v645
    %659 = vmatprep.subr.bf16.mxu0 0
    %660 = vmatpush1.bf16.msra.mxu0 0
    %661 = vmatprep.subr.bf16.mxu0 0
    %662 = vmatpush1.bf16.msra.mxu0 0
    %663 = vmatprep.subr.bf16.mxu0 0
    %664 = vmatpush1.bf16.msra.mxu0 0
    %665 = vmatprep.subr.bf16.mxu0 0
    %666 = vmatpush1.bf16.msra.mxu0 0
    %667 = vmatprep.subr.bf16.mxu0 0
    %668 = vmatpush1.bf16.msra.mxu0 0
    %669 = vmatprep.subr.bf16.mxu0 0
    %670 = vmatpush1.bf16.msra.mxu0 0
    %671 = vmatprep.subr.bf16.mxu0 0
    %672 = vmatpush1.bf16.msra.mxu0 0
    %673 = vmatprep.subr.bf16.mxu0 0
    %674 = vmatpush1.bf16.msra.mxu0 0
    %675 = vmatprep.subr.bf16.mxu0 0
    %676 = vmatpush1.bf16.msra.mxu0 0
    %677 = vmatprep.subr.bf16.mxu0 0
    %678 = vmatpush1.bf16.msra.mxu0 0
    %679 = vmatprep.subr.bf16.mxu0 0
    %680 = vmatpush1.bf16.msra.mxu0 0
    %681 = vmatprep.subr.bf16.mxu0 0
    %682 = vmatpush1.bf16.msra.mxu0 0
    %683 = vmatprep.subr.bf16.mxu0 0
    %684 = vmatpush1.bf16.msra.mxu0 0
    %685 = vmatprep.subr.bf16.mxu0 0
    %686 = vmatpush1.bf16.msra.mxu0 0
    %687 = vmatprep.mubr.bf16.mxu0 0
    %688 = vmatmul.mubr.bf16.gmra.mrb[0].mxu0 %v653
    %v689 = vpop.f32.mrb[0].mxu0
    %v690 = vadd.f32 %v650, %v689
    %v691 = vpop.f32.mrb[0].mxu0
    %v692 = vpop.f32.mrb[0].mxu0
    %v693 = vadd.f32 %v650, %v692
    %v694 = vpop.f32.mrb[0].mxu0
    %695 = vdwg.mxu0
    %v696 = vadd.f32 %v33, %v690
    %v697 = vadd.f32 %v34, %v693
    %v698 = vsel %vm73, %v696, 0.0
    %699 = vadd.xlane.f32.xlu0 %v698
    %v700 = vpop.xlane.xlu0 %699
    %v701 = vsel %vm73, %v697, 0.0
    %702 = vadd.xlane.f32.xlu0 %v701
    %v703 = vpop.xlane.xlu0 %702
    %v704 = vrcp.pop 32.0
    %v705 = vmul.f32 %v700, %v704
    %v706 = vmul.f32 %v703, %v704
    %v707 = vsub.f32 %v696, %v705
    %v708 = vsub.f32 %v697, %v706
    %v709 = vmul.f32 %v707, %v707
    %v710 = vmul.f32 %v708, %v708
    %v711 = vsel %vm73, %v709, 0.0
    %712 = vadd.xlane.f32.xlu0 %v711
    %v713 = vpop.xlane.xlu0 %712
    %v714 = vsel %vm73, %v710, 0.0
    %715 = vadd.xlane.f32.xlu0 %v714
    %v716 = vpop.xlane.xlu0 %715
    %v717 = vmul.f32 %v713, %v704
    %v718 = vmul.f32 %v716, %v704
    %v719 = vadd.f32 %v717, 1e-06
    %v720 = vadd.f32 %v718, 1e-06
    %v721 = vrsqrt.pop %v719
    %v722 = vrsqrt.pop %v720
    %v723 = vmul.f32 %v707, %v721
    %v724 = vmul.f32 %v708, %v722
    %v725 = vlaneseq
    %v726 = vshrl.u32 %v725, 7
    %v727 = vsub.s32 0, %v726
    %v728 = vrot.slane %v55, %v727
    %v729 = vmul.f32 %v723, %v728
    %v730 = vmul.f32 %v724, %v728
    %732 = vrot.lane.b32.xlu0 %v728, 96
    %v733 = vpop.permute.xlu0 %732
    %v735 = vadd.f32 %v729, %v733
    %v736 = vadd.f32 %v730, %v733
    %v737 = vpack.c.bf16 %v736, %v735
    %v738 = vlaneseq
    %v739 = vshrl.u32 %v738, 7
    %v740 = vsub.s32 0, %v739
    %v741 = vrot.slane %v56, %v740
    %v746 = vunpack.c.l.b16 %v46
    %v747 = vunpack.c.l.b16 %v47
    %v748 = vunpack.c.l.b16 %v48
    %v749 = vunpack.c.l.b16 %v49
    %v750 = vpack.c.b16 %v747, %v746
    %v751 = vpack.c.b16 %v749, %v748
    %v755 = vsel %vm73, %v737, 0
    %757 = vmatprep.subr.bf16.mxu0 0
    %758 = vmatpush1.bf16.msra.mxu0 %v750
    %759 = vmatprep.subr.bf16.mxu0 0
    %760 = vmatpush1.bf16.msra.mxu0 %v751
    %761 = vmatprep.subr.bf16.mxu0 0
    %762 = vmatpush1.bf16.msra.mxu0 0
    %763 = vmatprep.subr.bf16.mxu0 0
    %764 = vmatpush1.bf16.msra.mxu0 0
    %765 = vmatprep.subr.bf16.mxu0 0
    %766 = vmatpush1.bf16.msra.mxu0 0
    %767 = vmatprep.subr.bf16.mxu0 0
    %768 = vmatpush1.bf16.msra.mxu0 0
    %769 = vmatprep.subr.bf16.mxu0 0
    %770 = vmatpush1.bf16.msra.mxu0 0
    %771 = vmatprep.subr.bf16.mxu0 0
    %772 = vmatpush1.bf16.msra.mxu0 0
    %773 = vmatprep.subr.bf16.mxu0 0
    %774 = vmatpush1.bf16.msra.mxu0 0
    %775 = vmatprep.subr.bf16.mxu0 0
    %776 = vmatpush1.bf16.msra.mxu0 0
    %777 = vmatprep.subr.bf16.mxu0 0
    %778 = vmatpush1.bf16.msra.mxu0 0
    %779 = vmatprep.subr.bf16.mxu0 0
    %780 = vmatpush1.bf16.msra.mxu0 0
    %781 = vmatprep.subr.bf16.mxu0 0
    %782 = vmatpush1.bf16.msra.mxu0 0
    %783 = vmatprep.subr.bf16.mxu0 0
    %784 = vmatpush1.bf16.msra.mxu0 0
    %785 = vmatprep.subr.bf16.mxu0 0
    %786 = vmatpush1.bf16.msra.mxu0 0
    %787 = vmatprep.subr.bf16.mxu0 0
    %788 = vmatpush1.bf16.msra.mxu0 0
    %789 = vmatprep.mubr.bf16.mxu0 0
    %790 = vmatmul.mubr.bf16.gmra.mrb[0].mxu0 %v755
    %v791 = vpop.f32.mrb[0].mxu0
    %v792 = vadd.f32 %v741, %v791
    %v793 = vpop.f32.mrb[0].mxu0
    %v794 = vpop.f32.mrb[0].mxu0
    %v795 = vadd.f32 %v741, %v794
    %v796 = vpop.f32.mrb[0].mxu0
    %797 = vdwg.mxu0
    %v798 = vmax.f32 %v792, 0.0
    %v799 = vmax.f32 %v795, 0.0
    %v800 = vpack.c.bf16 %v799, %v798
    %v805 = vunpack.c.l.b16 %v50
    %v806 = vunpack.c.l.b16 %v51
    %v807 = vunpack.c.l.b16 %v52
    %v808 = vunpack.c.l.b16 %v53
    %v809 = vpack.c.b16 %v806, %v805
    %v810 = vpack.c.b16 %v808, %v807
    %812 = vrot.lane.b32.xlu0 %v741, 64
    %v813 = vpop.permute.xlu0 %812
    %vm815 = vcmask 523264
    %v817 = vsel %vm815, %v800, 0
    %v820 = vsel %vm815, %v809, 0
    %v823 = vsel %vm815, %v810, 0
    %825 = vmatprep.subr.bf16.mxu0 0
    %826 = vmatpush1.bf16.xpose.msra.mxu0 %v820
    %827 = vmatprep.subr.bf16.mxu0 0
    %828 = vmatpush1.bf16.xpose.msra.mxu0 %v823
    %829 = vmatprep.subr.bf16.mxu0 0
    %830 = vmatpush1.bf16.xpose.msra.mxu0 0
    %831 = vmatprep.subr.bf16.mxu0 0
    %832 = vmatpush1.bf16.xpose.msra.mxu0 0
    %833 = vmatprep.subr.bf16.mxu0 0
    %834 = vmatpush1.bf16.xpose.msra.mxu0 0
    %835 = vmatprep.subr.bf16.mxu0 0
    %836 = vmatpush1.bf16.xpose.msra.mxu0 0
    %837 = vmatprep.subr.bf16.mxu0 0
    %838 = vmatpush1.bf16.xpose.msra.mxu0 0
    %839 = vmatprep.subr.bf16.mxu0 0
    %840 = vmatpush1.bf16.xpose.msra.mxu0 0
    %841 = vmatprep.subr.bf16.mxu0 0
    %842 = vmatpush1.bf16.xpose.msra.mxu0 0
    %843 = vmatprep.subr.bf16.mxu0 0
    %844 = vmatpush1.bf16.xpose.msra.mxu0 0
    %845 = vmatprep.subr.bf16.mxu0 0
    %846 = vmatpush1.bf16.xpose.msra.mxu0 0
    %847 = vmatprep.subr.bf16.mxu0 0
    %848 = vmatpush1.bf16.xpose.msra.mxu0 0
    %849 = vmatprep.subr.bf16.mxu0 0
    %850 = vmatpush1.bf16.xpose.msra.mxu0 0
    %851 = vmatprep.subr.bf16.mxu0 0
    %852 = vmatpush1.bf16.xpose.msra.mxu0 0
    %853 = vmatprep.subr.bf16.mxu0 0
    %854 = vmatpush1.bf16.xpose.msra.mxu0 0
    %855 = vmatprep.subr.bf16.mxu0 0
    %856 = vmatpush1.bf16.xpose.msra.mxu0 0
    %857 = vmatprep.mubr.bf16.mxu0 0
    %858 = vmatmul.mubr.bf16.gmra.mrb[0].mxu0 %v817
    %v859 = vpop.f32.mrb[0].mxu0
    %v860 = vadd.f32 %v813, %v859
    %v861 = vpop.f32.mrb[0].mxu0
    %v862 = vpop.f32.mrb[0].mxu0
    %v863 = vadd.f32 %v813, %v862
    %v864 = vpop.f32.mrb[0].mxu0
    %865 = vdwg.mxu0
    %v866 = vadd.f32 %v735, %v860
    %v867 = vadd.f32 %v736, %v863
    %v868 = vsel %vm73, %v866, 0.0
    %869 = vadd.xlane.f32.xlu0 %v868
    %v870 = vpop.xlane.xlu0 %869
    %v871 = vsel %vm73, %v867, 0.0
    %872 = vadd.xlane.f32.xlu0 %v871
    %v873 = vpop.xlane.xlu0 %872
    %v874 = vmul.f32 %v870, %v704
    %v875 = vmul.f32 %v873, %v704
    %v876 = vsub.f32 %v866, %v874
    %v877 = vsub.f32 %v867, %v875
    %v878 = vmul.f32 %v876, %v876
    %v879 = vmul.f32 %v877, %v877
    %v880 = vsel %vm73, %v878, 0.0
    %881 = vadd.xlane.f32.xlu0 %v880
    %v882 = vpop.xlane.xlu0 %881
    %v883 = vsel %vm73, %v879, 0.0
    %884 = vadd.xlane.f32.xlu0 %v883
    %v885 = vpop.xlane.xlu0 %884
    %v886 = vmul.f32 %v882, %v704
    %v887 = vmul.f32 %v885, %v704
    %v888 = vadd.f32 %v886, 1e-06
    %v889 = vadd.f32 %v887, 1e-06
    %v890 = vrsqrt.pop %v888
    %v891 = vrsqrt.pop %v889
    %v892 = vmul.f32 %v876, %v890
    %v893 = vmul.f32 %v877, %v891
    %894 = vrot.lane.b32.xlu0 %v728, 64
    %v895 = vpop.permute.xlu0 %894
    %v897 = vmul.f32 %v892, %v895
    %v898 = vmul.f32 %v893, %v895
    %899 = vrot.lane.b32.xlu0 %v728, 32
    %v900 = vpop.permute.xlu0 %899
    %v902 = vadd.f32 %v897, %v900
    %v903 = vadd.f32 %v898, %v900
    %904 = vst.msk [vmem:[#allocation5] sm:$0xff] %vm73, %v902
    %905 = vst.msk [vmem:[#allocation5 + $0x8] sm:$0xff] %vm73, %v903
    // Predicated region
    $region22: #{encoder_layer.1} parent=1 // pred_check
      _
    $region23: #{encoder_layer.1} parent=1 // pred_check_branch
      %907 = sbr.rel (0) target = $region25
    $region24: #{encoder_layer.1} parent=1 // pred_region
      %s909 = ssub.s32 256, 256
      %910 = vsyncadd [#allocation4], %s909
      %s911 = sshll.u32 [#allocation5], 4
      %s912 = int_to_ptr.vmem [resolvable:$true] %s911
      %917 = dma.vmem_to_hbm [thread:$0]  %s912, 256, %s4, [#allocation4], 128, 128, 8
    $region25: #{encoder_layer.1} parent=1 // pred_fallthru
      _
    // Predicated region
    $region26: #{encoder_layer.1} parent=1 // pred_check
      _
    $region27: #{encoder_layer.1} parent=1 // pred_check_branch
      %919 = sbr.rel (0) target = $region29
    $region28: #{encoder_layer.1} parent=1 // pred_region
      %920 = dma.done [#allocation4], 256
    $region29: #{encoder_layer.1} parent=1 // pred_fallthru
      _
    %921 = vsyncpa [#allocation3], 1
    %922 = vsyncpa [#allocation4], 1

</llo_original>
